<compile_context>
chip_gen: v7x
topology: tpu7x:2x2x1
jax: 0.10.0
libtpu: 0.0.40
codegen_flags: <defaults>
</compile_context>

<pallas_src>
import jax
import jax.numpy as jnp
from jax.experimental import pallas as pl
from jax.experimental.pallas import tpu as pltpu

LANE = 128


def _default_vmem_limit():
    # v5e/v6e have 128 MiB VMEM -> use ~96 MiB; v7x has 64 MiB/TC -> cap at 48 MiB.
    try:
        cap = int(pltpu.get_tpu_info().vmem_capacity_bytes)
    except Exception:
        cap = 64 * 1024 * 1024  # conservative fallback, safe on every generation
    if cap > 64 * 1024 * 1024:
        return 96 * 1024 * 1024
    return 48 * 1024 * 1024


_VMEM_LIMIT = _default_vmem_limit()


# ----------------------------- helpers --------------------------------------

def _round_up(x, m):
    return (x + m - 1) // m * m


def _choose_tile_m(M, K, N, vmem_budget):
    """Largest M tile (multiple of 16, divisor of M) whose working set fits the
    budget, preferring >=2 grid steps so v7x's two TensorCores both get work."""
    best_single = None
    for tm in (1024, 512, 256, 128, 64, 32, 16):
        # double-buffered bf16 x tile + out tile, weight block (x2 buf), f32 temp, bias
        need = 2 * tm * K * 2 + 2 * tm * N * 2 + 2 * K * N * 2 + tm * N * 4 + N * 4
        if need > vmem_budget or M % tm != 0:
            continue
        if M // tm >= 2:
            return tm
        if best_single is None:
            best_single = tm
    return best_single  # may be None -> caller pads (rare fallback)


def _choose_tile_hw(HW):
    for ts in (2048, 1024, 512, 256, 128, 64, 32, 16):
        if HW % ts == 0:
            return ts
    return HW  # full-extent block is always a legal block shape


def _pick_row_tile(h):
    if h <= 32:
        return h
    for rt in (32, 16, 8):
        if h % rt == 0:
            return rt
    return h


# ----------------------------- Pallas kernels -------------------------------

def _mm_bias_relu_kernel(x_ref, w_ref, bias_ref, o_ref):
    # (TM, K) @ (K, N) on the MXU (bf16 in, f32 acc); folded-BN bias + ReLU on VPU.
    acc = jnp.dot(x_ref[...], w_ref[...], preferred_element_type=jnp.float32)
    o_ref[...] = jnp.maximum(acc + bias_ref[...], 0.0).astype(o_ref.dtype)


def _make_conv3x3_kernel(h, w, cin, cout, add_identity_residual, row_tile):
    """3x3 stride-1 pad-1 conv over one image.

    Padding is done in a VMEM scratch (no wrapper-side jnp.pad / extra HBM
    copy).  The 3 W-shifted slabs are built once and reused across the 3 H
    taps (leading-dim slices are free), so only 3 relayout copies instead of 9.
    Bias + identity residual + ReLU fused; output rows processed in row tiles
    so the f32 accumulator stays small.
    """
    hp = h + 2

    def kernel(x_ref, w_ref, bias_ref, o_ref, xp_ref):
        # xp_ref: (hp, wp, cin) bf16 zero-padded copy of the image, resident in VMEM.
        xp_ref[...] = jnp.zeros_like(xp_ref)
        xp_ref[1:1 + h, 1:1 + w, :] = x_ref[0]

        # Build the 3 W-shifted slabs once (the only relayout copies in this kernel).
        slabs = [xp_ref[:, kj:kj + w, :] for kj in range(3)]  # each (hp, w, cin)
        bias = bias_ref[...]                                   # (1, cout) f32

        for r0 in range(0, h, row_tile):
            acc = jnp.zeros((row_tile * w, cout), jnp.float32)
            for ki in range(3):
                for kj in range(3):
                    xwin = slabs[kj][r0 + ki:r0 + ki + row_tile]       # leading-dim slice: free
                    acc = acc + jnp.dot(xwin.reshape(row_tile * w, cin), w_ref[ki * 3 + kj],
                                        preferred_element_type=jnp.float32)
            y = acc + bias
            if add_identity_residual:
                # identity skip = the original input rows = centre window of the
                # already-resident padded scratch (no second HBM stream).
                res = slabs[1][1 + r0:1 + r0 + row_tile]
                y = y + res.reshape(row_tile * w, cin).astype(jnp.float32)
            y = jnp.maximum(y, 0.0)
            y3 = y.reshape(row_tile, w, cout).astype(o_ref.dtype)
            if row_tile == h:
                o_ref[...] = y3.reshape(1, h, w, cout)
            else:
                o_ref[0, r0:r0 + row_tile, :, :] = y3

    return kernel


def _make_expand_head_gap_kernel(inv_hw):
    """Expand 1x1 conv + head 1x1 conv + global average pooling, fused.

    Per spatial tile: (ts,p1)@(p1,p2)+bias+ReLU -> (ts,p2)@(p2,p3)+bias+ReLU,
    then accumulate the per-image channel sum in a VMEM scratch across the
    spatial grid axis.  The expand activation never touches HBM.
    """
    def kernel(x_ref, w1_ref, b1_ref, w2_ref, b2_ref, o_ref, acc_ref):
        s = pl.program_id(1)

        @pl.when(s == 0)
        def _():
            acc_ref[...] = jnp.zeros_like(acc_ref)

        y1 = jnp.dot(x_ref[0], w1_ref[...], preferred_element_type=jnp.float32)
        y1 = jnp.maximum(y1 + b1_ref[...], 0.0).astype(jnp.bfloat16)
        y2 = jnp.dot(y1, w2_ref[...], preferred_element_type=jnp.float32)
        y2 = jnp.maximum(y2 + b2_ref[...], 0.0)
        acc_ref[...] += jnp.sum(y2, axis=0, keepdims=True)

        @pl.when(s == pl.num_programs(1) - 1)
        def _():
            o_ref[...] = (acc_ref[...] * inv_hw).reshape(o_ref.shape)

    return kernel


# ----------------------------- Pallas wrappers ------------------------------

def matmul_bias_relu(x2d, w2d, bias2d):
    """(M, K) @ (K, N) + bias, ReLU, bf16 out.  Tiled over M only (N is lane-dense)."""
    M, K = x2d.shape
    N = w2d.shape[1]
    tm = _choose_tile_m(M, K, N, vmem_budget=int(_VMEM_LIMIT * 0.6))
    pad_m = 0
    if tm is None:  # fallback: pad rows with zeros (sliced off below)
        tm = 128
        pad_m = _round_up(M, tm) - M
        x2d = jnp.pad(x2d, ((0, pad_m), (0, 0)))
    Mp = M + pad_m

    out = pl.pallas_call(
        _mm_bias_relu_kernel,
        out_shape=jax.ShapeDtypeStruct((Mp, N), jnp.bfloat16),
        grid_spec=pltpu.PrefetchScalarGridSpec(
            num_scalar_prefetch=0,
            grid=(Mp // tm,),
            in_specs=[
                pl.BlockSpec((tm, K), lambda i: (i, 0)),
                pl.BlockSpec((K, N), lambda i: (0, 0)),
                pl.BlockSpec((1, N), lambda i: (0, 0)),
            ],
            out_specs=pl.BlockSpec((tm, N), lambda i: (i, 0)),
        ),
        compiler_params=pltpu.CompilerParams(
            dimension_semantics=("parallel",),
            vmem_limit_bytes=_VMEM_LIMIT,
        ),
    )(x2d.astype(jnp.bfloat16), w2d, bias2d)
    return out[:M] if pad_m else out


def conv3x3_s1_bn_relu(x_nhwc, w9, bias2d, add_identity_residual):
    """3x3 stride-1 pad-1 conv; padding, tap loop, bias, identity skip and ReLU
    all fused inside one kernel (one grid step per image)."""
    n, h, w, cin = x_nhwc.shape
    cout = w9.shape[-1]
    if add_identity_residual:
        assert cin == cout, "identity residual requires cin == cout"
    hp, wp = h + 2, w + 2
    row_tile = _pick_row_tile(h)
    # TODO(synk): for large resolutions on v7x (64 MiB VMEM), add a grid axis over
    # H row-tiles with 2 halo rows instead of keeping the whole image resident.

    kernel = _make_conv3x3_kernel(h, w, cin, cout, add_identity_residual, row_tile)
    return pl.pallas_call(
        kernel,
        out_shape=jax.ShapeDtypeStruct((n, h, w, cout), jnp.bfloat16),
        grid_spec=pltpu.PrefetchScalarGridSpec(
            num_scalar_prefetch=0,
            grid=(n,),
            in_specs=[
                pl.BlockSpec((1, h, w, cin), lambda i: (i, 0, 0, 0)),
                pl.BlockSpec((9, cin, cout), lambda i: (0, 0, 0)),
                pl.BlockSpec((1, cout), lambda i: (0, 0)),
            ],
            out_specs=pl.BlockSpec((1, h, w, cout), lambda i: (i, 0, 0, 0)),
            scratch_shapes=[pltpu.VMEM((hp, wp, cin), jnp.bfloat16)],
        ),
        compiler_params=pltpu.CompilerParams(
            dimension_semantics=("parallel",),
            vmem_limit_bytes=_VMEM_LIMIT,
        ),
    )(x_nhwc, w9, bias2d)


def expand_head_gap(x_nhwc, w1, b1, w2, b2):
    """Expand 1x1 conv + head 1x1 conv + BN biases + ReLU fused with global
    average pooling -> (N, C) features.  The expand activation stays in VMEM."""
    n, h, w, c1 = x_nhwc.shape
    c2 = w1.shape[1]
    c3 = w2.shape[1]
    hw = h * w
    x3 = x_nhwc.reshape(n, hw, c1)
    ts = _choose_tile_hw(hw)
    kernel = _make_expand_head_gap_kernel(1.0 / float(hw))

    out = pl.pallas_call(
        kernel,
        out_shape=jax.ShapeDtypeStruct((n, 1, c3), jnp.float32),
        grid_spec=pltpu.PrefetchScalarGridSpec(
            num_scalar_prefetch=0,
            grid=(n, hw // ts),
            in_specs=[
                pl.BlockSpec((1, ts, c1), lambda i, j: (i, j, 0)),
                pl.BlockSpec((c1, c2), lambda i, j: (0, 0)),
                pl.BlockSpec((1, c2), lambda i, j: (0, 0)),
                pl.BlockSpec((c2, c3), lambda i, j: (0, 0)),
                pl.BlockSpec((1, c3), lambda i, j: (0, 0)),
            ],
            out_specs=pl.BlockSpec((1, 1, c3), lambda i, j: (i, 0, 0)),
            scratch_shapes=[pltpu.VMEM((1, c3), jnp.float32)],
        ),
        compiler_params=pltpu.CompilerParams(
            dimension_semantics=("parallel", "arbitrary"),
            vmem_limit_bytes=_VMEM_LIMIT,
        ),
    )(x3, w1, b1, w2, b2)
    return out.reshape(n, c3)


# ------------------------------- Conv plumbing ------------------------------

def im2col(x_nhwc, kh, kw, stride, pad):
    """Plain-JAX patch extraction (N*Ho*Wo, kh*kw*Cin).  Only used for the stem
    (Cin=3), where the 9x expansion is a negligible 27-channel tensor."""
    n, h, w, c = x_nhwc.shape
    xp = jnp.pad(x_nhwc, ((0, 0), (pad, pad), (pad, pad), (0, 0)))
    ho = (h + 2 * pad - kh) // stride + 1
    wo = (w + 2 * pad - kw) // stride + 1
    cols = []
    for i in range(kh):
        for j in range(kw):
            cols.append(xp[:, i:i + stride * ho:stride, j:j + stride * wo:stride, :])
    patches = jnp.concatenate(cols, axis=-1)  # (n, ho, wo, kh*kw*c)
    return patches.reshape(n * ho * wo, kh * kw * c), ho, wo


def make_conv_bn_params(key, kh, kw, cin, cout, cin_pad, cout_pad, eps=1e-5):
    """Deterministic conv weights + inference BatchNorm folded into the weights.
    cin/cout are zero-padded to lane-dense widths (padded channels stay 0)."""
    k_w, kg, kb, km, kv = jax.random.split(key, 5)
    fan_in = kh * kw * cin
    w = jax.random.normal(k_w, (kh, kw, cin, cout), jnp.float32) * jnp.sqrt(2.0 / fan_in)
    gamma = 1.0 + 0.1 * jax.random.normal(kg, (cout,), jnp.float32)
    beta = 0.1 * jax.random.normal(kb, (cout,), jnp.float32)
    mean = 0.05 * jax.random.normal(km, (cout,), jnp.float32)
    var = jnp.abs(1.0 + 0.1 * jax.random.normal(kv, (cout,), jnp.float32))
    scale = gamma / jnp.sqrt(var + eps)
    bias = beta - mean * scale
    # Fold BN scale into the weights; zero-pad cin/cout for lane-dense layouts.
    w = w * scale[None, None, None, :]
    w = jnp.pad(w, ((0, 0), (0, 0), (0, cin_pad - cin), (0, cout_pad - cout)))
    bias = jnp.pad(bias, (0, cout_pad - cout))
    return {"w": w.astype(jnp.bfloat16),
            "bias": bias.reshape(1, cout_pad).astype(jnp.float32)}


# ------------------------------- Encoder module ------------------------------

class GENetEncoderPallas:
    """Simplified GENet-style encoder: extract_features(batch) -> (N, C) features.

    Backbone: stem 3x3/s2 conv-bn-relu -> 3x3 residual conv-bn-add-relu ->
    [1x1 expand conv-bn-relu -> 1x1 head conv-bn-relu -> global avg pool] (fused).
    """
    # TODO(synk): the exact genet_small/normal/large module_list (XX/BL/DW block
    # schedule + pretrained weights) is external to this module and is not
    # reproduced; this is a representative conv-bn-relu backbone with the same
    # extract_features semantics (conv stack + global pool, no fc_linear).

    def __init__(self, key, base="small"):
        widths = {"small": (32, 32, 64, 128),
                  "normal": (48, 48, 96, 192),
                  "large": (64, 64, 128, 256)}[base]
        c0, c1, c2, c3 = widths
        p0, p1, p2, p3 = (_round_up(c, LANE) for c in (c0, c1, c2, c3))
        ks = jax.random.split(key, 4)
        # stem keeps its raw 3 input channels (K=27 contraction); couts lane-padded.
        self.stem = make_conv_bn_params(ks[0], 3, 3, 3, c0, cin_pad=3, cout_pad=p0)
        self.res = make_conv_bn_params(ks[1], 3, 3, c0, c1, cin_pad=p0, cout_pad=p1)
        self.expand = make_conv_bn_params(ks[2], 1, 1, c1, c2, cin_pad=p1, cout_pad=p2)
        self.head = make_conv_bn_params(ks[3], 1, 1, c2, c3, cin_pad=p2, cout_pad=p3)
        self._c = (c0, c1, c2, c3)
        self._p = (p0, p1, p2, p3)
        self._residual_ok = (c0 == c1 and p0 == p1)
        self._out_channels = c3

    def out_channels(self):
        return self._out_channels

    def in_features(self):
        return self._out_channels

    def __call__(self, x_nchw):
        c0, c1, c2, c3 = self._c
        p0, p1, p2, p3 = self._p
        n = x_nchw.shape[0]

        # NCHW (PyTorch convention) -> NHWC; cast to bf16 BEFORE the transpose
        # so the layout change moves half the bytes.
        x = jnp.transpose(x_nchw.astype(jnp.bfloat16), (0, 2, 3, 1))

        # Stem: 3x3 stride-2 conv via im2col (Cin=3 -> tiny K=27 patch tensor).
        x2d, ho, wo = im2col(x, 3, 3, stride=2, pad=1)
        w2d = self.stem["w"].reshape(9 * 3, p0)
        y = matmul_bias_relu(x2d, w2d, self.stem["bias"]).reshape(n, ho, wo, p0)

        # Residual block: 3x3 stride-1 conv; in-kernel padding + tap loop with
        # 3 reusable W-shifted slabs; identity skip read from the resident
        # padded scratch; bias + add + ReLU fused.
        w9 = self.res["w"].reshape(9, p0, p1)
        y = conv3x3_s1_bn_relu(y, w9, self.res["bias"],
                               add_identity_residual=self._residual_ok)

        # Expand 1x1 + head 1x1 + global average pooling, fused in one kernel.
        feats = expand_head_gap(
            y,
            self.expand["w"].reshape(p1, p2), self.expand["bias"],
            self.head["w"].reshape(p2, p3), self.head["bias"])

        # Drop the zero-padded channels; extract_features output is (N, c3).
        return feats[:, :c3]


if __name__ == "__main__":
    key = jax.random.PRNGKey(0)
    k_params, k_x = jax.random.split(key)
    enc = GENetEncoderPallas(k_params, base="small")
    x = jax.random.normal(k_x, (2, 3, 32, 32), jnp.float32)  # NCHW input batch
    feats = jax.block_until_ready(enc(x))
    assert feats.shape == (2, enc.out_channels()), feats.shape
    assert bool(jnp.all(jnp.isfinite(feats)))
    print("KERNEL_OK")
</pallas_src>

<mosaic_0001>
module attributes {stable_mosaic.version = 11 : i64} {
  func.func @_mm_bias_relu_kernel(%arg0: i32, %arg1: memref<256x27xbf16, #tpu.memory_space<vmem>>, %arg2: memref<27x128xbf16, #tpu.memory_space<vmem>>, %arg3: memref<1x128xf32, #tpu.memory_space<vmem>>, %arg4: memref<256x128xbf16, #tpu.memory_space<vmem>>) attributes {dimension_semantics = [#tpu.dimension_semantics<parallel>], iteration_bounds = array<i64: 2>, scalar_prefetch = 0 : i64, scratch_operands = 0 : i64, tpu.core_type = #tpu.core_type<tc>, window_params = [{transform_indices = @transform_0, window_bounds = array<i64: 256, 27>}, {pipeline_mode = #tpu.pipeline_mode<synchronous>, transform_indices = @transform_1, window_bounds = array<i64: 27, 128>}, {pipeline_mode = #tpu.pipeline_mode<synchronous>, transform_indices = @transform_2, window_bounds = array<i64: 1, 128>}, {transform_indices = @transform_3, window_bounds = array<i64: 256, 128>}]} {
    %c0 = arith.constant 0 : index
    %c0_0 = arith.constant 0 : index
    %0 = vector.load %arg1[%c0, %c0_0] : memref<256x27xbf16, #tpu.memory_space<vmem>>, vector<256x27xbf16>
    %c0_1 = arith.constant 0 : index
    %c0_2 = arith.constant 0 : index
    %1 = vector.load %arg2[%c0_1, %c0_2] : memref<27x128xbf16, #tpu.memory_space<vmem>>, vector<27x128xbf16>
    %cst = arith.constant dense<0.000000e+00> : vector<256x128xf32>
    %2 = tpu.matmul %0, %1, %cst {dimension_numbers = #tpu.dot_dimension_numbers<[1], [0], [0], [1], [0, 0, 1, 1], [], []>} : vector<256x27xbf16>, vector<27x128xbf16>, vector<256x128xf32> -> vector<256x128xf32>
    %c0_3 = arith.constant 0 : index
    %c0_4 = arith.constant 0 : index
    %3 = vector.load %arg3[%c0_3, %c0_4] : memref<1x128xf32, #tpu.memory_space<vmem>>, vector<1x128xf32>
    %4 = vector.broadcast %3 : vector<1x128xf32> to vector<256x128xf32>
    %5 = arith.addf %2, %4 : vector<256x128xf32>
    %cst_5 = arith.constant 0.000000e+00 : f32
    %6 = vector.broadcast %cst_5 : f32 to vector<256x128xf32>
    %7 = arith.maximumf %5, %6 : vector<256x128xf32>
    %8 = arith.truncf %7 : vector<256x128xf32> to vector<256x128xbf16>
    %c0_6 = arith.constant 0 : index
    %c0_7 = arith.constant 0 : index
    %9 = vector.load %arg4[%c0_6, %c0_7] : memref<256x128xbf16, #tpu.memory_space<vmem>>, vector<256x128xbf16>
    tpu.vector_store %arg4[%c0_6, %c0_7], %8 {strides = array<i32>} : memref<256x128xbf16, #tpu.memory_space<vmem>>, vector<256x128xbf16>,
    return
  }
  func.func @transform_0(%arg0: i32) -> (i32, i32) {
    %c0_i32 = arith.constant 0 : i32
    %c0_i32_0 = arith.constant 0 : i32
    return %arg0, %c0_i32 : i32, i32
  }
  func.func @transform_1(%arg0: i32) -> (i32, i32) {
    %c0_i32 = arith.constant 0 : i32
    %c0_i32_0 = arith.constant 0 : i32
    %c0_i32_1 = arith.constant 0 : i32
    return %c0_i32, %c0_i32_0 : i32, i32
  }
  func.func @transform_2(%arg0: i32) -> (i32, i32) {
    %c0_i32 = arith.constant 0 : i32
    %c0_i32_0 = arith.constant 0 : i32
    %c0_i32_1 = arith.constant 0 : i32
    return %c0_i32, %c0_i32_0 : i32, i32
  }
  func.func @transform_3(%arg0: i32) -> (i32, i32) {
    %c0_i32 = arith.constant 0 : i32
    %c0_i32_0 = arith.constant 0 : i32
    return %arg0, %c0_i32 : i32, i32
  }
}

</mosaic_0001>

<llo_original>
// kernel: tpu_custom_call.1
$region0: #{tpu_custom_call.1}
  #allocation0 [shape = 'u32[]', space=smem, size = 0x4, offset = 0x4, fixed_abs, tag = 'smem constant byte address 0x4 - core index']
  #allocation1 [shape = 'u32[144,128]{1,0:T(1,128)}', space=vmem, size = 0x12000, scoped, tag = 'internal scratch']
  %s0 = inlined_call_operand.vmem [shape: bf16[512,27], index: 0, kind: input, shape index: {}]
  %s1 = inlined_call_operand.vmem [shape: bf16[27,128], index: 1, kind: input, shape index: {}]
  %s2 = inlined_call_operand.vmem [shape: f32[1,128], index: 2, kind: input, shape index: {}]
  %s3 = inlined_call_operand.hbm [shape: bf16[512,128], index: 3, kind: output, shape index: {}]
  %s4 = sld [smem:[#allocation0]]
  $region45: #{tpu_custom_call.1} parent=0
    _
  %s6 = ssub.s32 1, %s4
  %s7 = scalar_select 0, %s6, %s4
  $region1: #{tpu_custom_call.1} parent=0
    #allocation2 [shape = 'u8[131072]{0}', space=vmem, size = 0x20000, scoped, tag = 'output window, operand 0']
    #allocation3 [shape = 's32[2]{0}', space=sflag, size = 0x8, scoped, tag = 'scoped memory for tpu_custom_call.1']
    %8 = vsyncpa [#allocation3], 0
    %s9 = scalar_lea.sflag [#allocation3], 1
    %10 = vsyncpa %s9, 0
    loop: start=0, step=1, limit=4
    $region2: #{tpu_custom_call.1} parent=1 // loop_pre_header
      _
    $region3: #{tpu_custom_call.1} parent=1 // loop_header
      %s12 = sphi 0, %s16
      %p13 = scmp.ge.s32.totalorder %s12, 4
      %s22 = sphi 0, %s24
      %s25 = sphi 0, %s22
      %s26 = sphi 0, %s25
      %s42 = sphi 0, %s26
      %s46 = sphi 0, %s46
      %s48 = sphi 0, %s46
      %s49 = sphi 0, %s48
      %s63 = sphi 0, %s49
      %s67 = sphi 0, %s67
      %s69 = sphi 0, %s67
      %s70 = sphi 0, %s69
      %s84 = sphi 0, %s70
      %s90 = sphi 0, %s92
      %s93 = sphi 0, %s90
      %s94 = sphi 0, %s93
      %s110 = sphi 0, %s94
    $region4: #{tpu_custom_call.1} parent=1 // loop_header_branch
      %15 = sbr.rel (%p13) target = $region8
    $region5: #{tpu_custom_call.1} parent=1 // loop_body
      %s17 = ssub.s32 %s12, 1
      %s18 = ssub.s32 %s12, 2
      %s19 = sadd.s32 %s12, 1
      %s20 = ssub.s32 %s12, %s19
      %p21 = scmp.eq.s32.totalorder %s20, 0
      %s23 = sadd.s32 %s22, 1
      %s24 = scalar_select %p21, %s22, %s23
      %p27 = pneg %p21
      %p28 = scmp.eq.s32.totalorder %s12, 1
      %p29 = por %p27, %p28
      %p30 = scmp.ne.s32.totalorder %s22, %s25
      %p31 = scmp.eq.s32.totalorder %s12, 0
      %p32 = por %p30, %p31
      %p33 = scmp.ne.s32.totalorder %s22, %s25
      %p34 = scmp.eq.s32.totalorder %s17, 1
      %p35 = por %p33, %p34
      %p36 = scmp.ne.s32.totalorder %s25, %s26
      %p37 = scmp.eq.s32.totalorder %s17, 0
      %p38 = por %p36, %p37
      %p39 = scmp.ne.s32.totalorder %s25, %s26
      %p40 = scmp.eq.s32.totalorder %s18, 1
      %p41 = por %p39, %p40
      %p43 = scmp.ne.s32.totalorder %s26, %s42
      %p44 = scmp.eq.s32.totalorder %s18, 0
      %p45 = por %p43, %p44
      %s47 = sadd.s32 %s46, 1
      %p50 = scmp.eq.s32.totalorder %s12, 1
      %p51 = scmp.ne.s32.totalorder %s46, %s48
      %p52 = scmp.eq.s32.totalorder %s12, 0
      %p53 = por %p51, %p52
      %p54 = scmp.ne.s32.totalorder %s46, %s48
      %p55 = scmp.eq.s32.totalorder %s17, 1
      %p56 = por %p54, %p55
      %p57 = scmp.ne.s32.totalorder %s48, %s49
      %p58 = scmp.eq.s32.totalorder %s17, 0
      %p59 = por %p57, %p58
      %p60 = scmp.ne.s32.totalorder %s48, %s49
      %p61 = scmp.eq.s32.totalorder %s18, 1
      %p62 = por %p60, %p61
      %p64 = scmp.ne.s32.totalorder %s49, %s63
      %p65 = scmp.eq.s32.totalorder %s18, 0
      %p66 = por %p64, %p65
      %s68 = sadd.s32 %s67, 1
      %p71 = scmp.eq.s32.totalorder %s12, 1
      %p72 = scmp.ne.s32.totalorder %s67, %s69
      %p73 = scmp.eq.s32.totalorder %s12, 0
      %p74 = por %p72, %p73
      %p75 = scmp.ne.s32.totalorder %s67, %s69
      %p76 = scmp.eq.s32.totalorder %s17, 1
      %p77 = por %p75, %p76
      %p78 = scmp.ne.s32.totalorder %s69, %s70
      %p79 = scmp.eq.s32.totalorder %s17, 0
      %p80 = por %p78, %p79
      %p81 = scmp.ne.s32.totalorder %s69, %s70
      %p82 = scmp.eq.s32.totalorder %s18, 1
      %p83 = por %p81, %p82
      %p85 = scmp.ne.s32.totalorder %s70, %s84
      %p86 = scmp.eq.s32.totalorder %s18, 0
      %p87 = por %p85, %p86
      %s88 = ssub.s32 %s12, %s19
      %p89 = scmp.eq.s32.totalorder %s88, 0
      %s91 = sadd.s32 %s90, 1
      %s92 = scalar_select %p89, %s90, %s91
      %p95 = pneg %p89
      %p96 = scmp.eq.s32.totalorder %s12, 1
      %p97 = por %p95, %p96
      %p98 = scmp.ne.s32.totalorder %s90, %s93
      %p99 = scmp.eq.s32.totalorder %s12, 0
      %p100 = por %p98, %p99
      %p101 = scmp.ne.s32.totalorder %s90, %s93
      %p102 = scmp.eq.s32.totalorder %s17, 1
      %p103 = por %p101, %p102
      %p104 = scmp.ne.s32.totalorder %s93, %s94
      %p105 = scmp.eq.s32.totalorder %s17, 0
      %p106 = por %p104, %p105
      %p107 = scmp.ne.s32.totalorder %s93, %s94
      %p108 = scmp.eq.s32.totalorder %s18, 1
      %p109 = por %p107, %p108
      %p111 = scmp.ne.s32.totalorder %s94, %s110
      %p112 = scmp.eq.s32.totalorder %s18, 0
      %p113 = por %p111, %p112
      %p114 = scmp.le.s32.totalorder 1, %s12
      %p115 = scmp.lt.s32.totalorder %s12, 3
      %p116 = pnand %p114, %p115
      %p117 = pneg %p116
      // Predicated region
      $region9: #{tpu_custom_call.1} parent=5 // pred_check
        _
      $region10: #{tpu_custom_call.1} parent=5 // pred_check_branch
        %119 = sbr.rel (%p116) target = $region12
      $region11: #{tpu_custom_call.1} parent=5 // pred_region
        %s120 = ssub.s32 %s12, 1
        // Predicated region
        $region13: #{tpu_custom_call.1} parent=11 // pred_check
          %p121 = pneg %p59
        $region14: #{tpu_custom_call.1} parent=11 // pred_check_branch
          %123 = sbr.rel (%p121) target = $region16
        $region15: #{tpu_custom_call.1} parent=11 // pred_region
          _
        $region16: #{tpu_custom_call.1} parent=11 // pred_fallthru
          _
        // Predicated region
        $region17: #{tpu_custom_call.1} parent=11 // pred_check
          %p124 = pneg %p80
        $region18: #{tpu_custom_call.1} parent=11 // pred_check_branch
          %126 = sbr.rel (%p124) target = $region20
        $region19: #{tpu_custom_call.1} parent=11 // pred_region
          _
        $region20: #{tpu_custom_call.1} parent=11 // pred_fallthru
          _
      $region12: #{tpu_custom_call.1} parent=5 // pred_fallthru
        _
      %p127 = scmp.lt.s32.totalorder %s12, 2
      // Predicated region
      $region21: #{tpu_custom_call.1} parent=5 // pred_check
        %p128 = pneg %p127
      $region22: #{tpu_custom_call.1} parent=5 // pred_check_branch
        %130 = sbr.rel (%p128) target = $region24
      $region23: #{tpu_custom_call.1} parent=5 // pred_region
        // Predicated region
        $region25: #{tpu_custom_call.1} parent=23 // pred_check
          %p131 = pneg %p32
        $region26: #{tpu_custom_call.1} parent=23 // pred_check_branch
          %133 = sbr.rel (%p131) target = $region28
        $region27: #{tpu_custom_call.1} parent=23 // pred_region
          %s134 = smul.u32 32, %s12
          %p135 = scmp.lt.s32.totalorder %s134, 63
          %s136 = scalar_select %p135, %s134, 63
          %s137 = smul.addr %s136, 4
          %s138 = scalar_lea.vmem %s0, %s137
          %s139 = smul.u32 32, %s12
        $region28: #{tpu_custom_call.1} parent=23 // pred_fallthru
          _
      $region24: #{tpu_custom_call.1} parent=5 // pred_fallthru
        _
      %p140 = scmp.le.s32.totalorder 1, %s12
      %p141 = scmp.lt.s32.totalorder %s12, 3
      %p142 = pnand %p140, %p141
      %p143 = pneg %p142
      // Predicated region
      $region29: #{tpu_custom_call.1} parent=5 // pred_check
        _
      $region30: #{tpu_custom_call.1} parent=5 // pred_check_branch
        %145 = sbr.rel (%p142) target = $region32
      $region31: #{tpu_custom_call.1} parent=5 // pred_region
        %s146 = ssub.s32 %s12, 1
        %s147 = smul.u32 32, %s17
        %p148 = scmp.lt.s32.totalorder %s147, 63
        %s149 = scalar_select %p148, %s147, 63
        %s150 = smul.addr %s149, 4
        %s151 = scalar_lea.vmem %s0, %s150
        %p152 = pneg %p38
        %p153 = pneg %p35
        %p154 = pneg %p59
        %p155 = pneg %p56
        %p156 = pneg %p80
        %p157 = pneg %p77
        %p158 = pneg %p106
        %p159 = pneg %p103
        %s160 = sand.u32 %s93, 1
        %s161 = scalar_lea.sflag [#allocation3], %s160
        %s162 = sand.u32 %s93, 1
        %s163 = smul.addr %s162, 128
        %s164 = scalar_lea.vmem [#allocation2], %s163
        %s165 = smul.u32 32, %s17
        %p166 = scmp.lt.s32.totalorder %s165, 63
        %s167 = scalar_select %p166, %s165, 63
        %s168 = smul.addr %s167, 4
        %s169 = scalar_lea.vmem %s0, %s168
        %s170 = smul.u32 32, %s17
        %s171 = smul.u32 32, %s17
        %v173 = vld [vmem:[%s169] sm:$0xf]
        %v174 = vld [vmem:[%s169 + $0x4] sm:$0xf]
        %v175 = vld [vmem:[%s169 + $0x8] sm:$0xf]
        %v176 = vld [vmem:[%s169 + $0xc] sm:$0xf]
        %v177 = vld [vmem:[%s169 + $0x10] sm:$0xf]
        %v178 = vld [vmem:[%s169 + $0x14] sm:$0xf]
        %v179 = vld [vmem:[%s169 + $0x18] sm:$0xf]
        %v180 = vld [vmem:[%s169 + $0x1c] sm:$0xf]
        %v181 = vld [vmem:[%s169 + $0x20] sm:$0xf]
        %v182 = vld [vmem:[%s169 + $0x24] sm:$0xf]
        %v183 = vld [vmem:[%s169 + $0x28] sm:$0xf]
        %v184 = vld [vmem:[%s169 + $0x2c] sm:$0xf]
        %v185 = vld [vmem:[%s169 + $0x30] sm:$0xf]
        %v186 = vld [vmem:[%s169 + $0x34] sm:$0xf]
        %v187 = vld [vmem:[%s169 + $0x38] sm:$0xf]
        %v188 = vld [vmem:[%s169 + $0x3c] sm:$0xf]
        %v189 = vld [vmem:[%s169 + $0x40] sm:$0xf]
        %v190 = vld [vmem:[%s169 + $0x44] sm:$0xf]
        %v191 = vld [vmem:[%s169 + $0x48] sm:$0xf]
        %v192 = vld [vmem:[%s169 + $0x4c] sm:$0xf]
        %v193 = vld [vmem:[%s169 + $0x50] sm:$0xf]
        %v194 = vld [vmem:[%s169 + $0x54] sm:$0xf]
        %v195 = vld [vmem:[%s169 + $0x58] sm:$0xf]
        %v196 = vld [vmem:[%s169 + $0x5c] sm:$0xf]
        %v197 = vld [vmem:[%s169 + $0x60] sm:$0xf]
        %v198 = vld [vmem:[%s169 + $0x64] sm:$0xf]
        %v199 = vld [vmem:[%s169 + $0x68] sm:$0xf]
        %v200 = vld [vmem:[%s169 + $0x6c] sm:$0xf]
        %v201 = vld [vmem:[%s169 + $0x70] sm:$0xf]
        %v202 = vld [vmem:[%s169 + $0x74] sm:$0xf]
        %v203 = vld [vmem:[%s169 + $0x78] sm:$0xf]
        %v204 = vld [vmem:[%s169 + $0x7c] sm:$0xf]
        %v205 = vld [vmem:[%s1] sm:$0xf]
        %v206 = vld [vmem:[%s1 + $0x4] sm:$0xf]
        %v207 = vld [vmem:[%s1 + $0x8] sm:$0xf]
        %v208 = vld [vmem:[%s1 + $0xc] sm:$0x3]
        %v209 = vld [vmem:[%s2] sm:$0x1]
        %v211 = vlaneseq
        %v212 = vshrl.u32 %v211, 7
        %v213 = vsub.s32 0, %v212
        %v214 = vrot.slane %v209, %v213
        %v248 = vunpack.c.l.b16 %v173
        %v249 = vunpack.c.l.b16 %v174
        %v250 = vunpack.c.l.b16 %v175
        %v251 = vunpack.c.l.b16 %v176
        %v252 = vunpack.c.l.b16 %v177
        %v253 = vunpack.c.l.b16 %v178
        %v254 = vunpack.c.l.b16 %v179
        %v255 = vunpack.c.l.b16 %v180
        %v256 = vunpack.c.l.b16 %v181
        %v257 = vunpack.c.l.b16 %v182
        %v258 = vunpack.c.l.b16 %v183
        %v259 = vunpack.c.l.b16 %v184
        %v260 = vunpack.c.l.b16 %v185
        %v261 = vunpack.c.l.b16 %v186
        %v262 = vunpack.c.l.b16 %v187
        %v263 = vunpack.c.l.b16 %v188
        %v264 = vunpack.c.l.b16 %v189
        %v265 = vunpack.c.l.b16 %v190
        %v266 = vunpack.c.l.b16 %v191
        %v267 = vunpack.c.l.b16 %v192
        %v268 = vunpack.c.l.b16 %v193
        %v269 = vunpack.c.l.b16 %v194
        %v270 = vunpack.c.l.b16 %v195
        %v271 = vunpack.c.l.b16 %v196
        %v272 = vunpack.c.l.b16 %v197
        %v273 = vunpack.c.l.b16 %v198
        %v274 = vunpack.c.l.b16 %v199
        %v275 = vunpack.c.l.b16 %v200
        %v276 = vunpack.c.l.b16 %v201
        %v277 = vunpack.c.l.b16 %v202
        %v278 = vunpack.c.l.b16 %v203
        %v279 = vunpack.c.l.b16 %v204
        %v280 = vpack.c.b16 %v249, %v248
        %v281 = vpack.c.b16 %v251, %v250
        %v282 = vpack.c.b16 %v253, %v252
        %v283 = vpack.c.b16 %v255, %v254
        %v284 = vpack.c.b16 %v257, %v256
        %v285 = vpack.c.b16 %v259, %v258
        %v286 = vpack.c.b16 %v261, %v260
        %v287 = vpack.c.b16 %v263, %v262
        %v288 = vpack.c.b16 %v265, %v264
        %v289 = vpack.c.b16 %v267, %v266
        %v290 = vpack.c.b16 %v269, %v268
        %v291 = vpack.c.b16 %v271, %v270
        %v292 = vpack.c.b16 %v273, %v272
        %v293 = vpack.c.b16 %v275, %v274
        %v294 = vpack.c.b16 %v277, %v276
        %v295 = vpack.c.b16 %v279, %v278
        %v300 = vunpack.c.l.b16 %v205
        %v301 = vunpack.c.l.b16 %v206
        %v302 = vunpack.c.l.b16 %v207
        %v303 = vunpack.c.l.b16 %v208
        %v304 = vpack.c.b16 %v301, %v300
        %v305 = vpack.c.b16 %v303, %v302
        %vm307 = vcmask 220160
        %v309 = vsel %vm307, %v280, 0
        %v312 = vsel %vm307, %v281, 0
        %v315 = vsel %vm307, %v282, 0
        %v318 = vsel %vm307, %v283, 0
        %v321 = vsel %vm307, %v284, 0
        %v324 = vsel %vm307, %v285, 0
        %v327 = vsel %vm307, %v286, 0
        %v330 = vsel %vm307, %v287, 0
        %v333 = vsel %vm307, %v288, 0
        %v336 = vsel %vm307, %v289, 0
        %v339 = vsel %vm307, %v290, 0
        %v342 = vsel %vm307, %v291, 0
        %v345 = vsel %vm307, %v292, 0
        %v348 = vsel %vm307, %v293, 0
        %v351 = vsel %vm307, %v294, 0
        %v354 = vsel %vm307, %v295, 0
        %vm356 = vcmask 1044480
        %vm357 = vcmask 1045504
        %v358 = vsel %vm356, 4294967295, 65535
        %v359 = vsel %vm357, %v358, 0
        %v361 = vand.u32 %v305, %v359
        %363 = vmatprep.subr.bf16.mxu0 0
        %364 = vmatpush1.bf16.msra.mxu0 %v304
        %365 = vmatprep.subr.bf16.mxu0 0
        %366 = vmatpush1.bf16.msra.mxu0 %v361
        %367 = vmatprep.subr.bf16.mxu0 0
        %368 = vmatpush1.bf16.msra.mxu0 0
        %369 = vmatprep.subr.bf16.mxu0 0
        %370 = vmatpush1.bf16.msra.mxu0 0
        %371 = vmatprep.subr.bf16.mxu0 0
        %372 = vmatpush1.bf16.msra.mxu0 0
        %373 = vmatprep.subr.bf16.mxu0 0
        %374 = vmatpush1.bf16.msra.mxu0 0
        %375 = vmatprep.subr.bf16.mxu0 0
        %376 = vmatpush1.bf16.msra.mxu0 0
        %377 = vmatprep.subr.bf16.mxu0 0
        %378 = vmatpush1.bf16.msra.mxu0 0
        %379 = vmatprep.subr.bf16.mxu0 0
        %380 = vmatpush1.bf16.msra.mxu0 0
        %381 = vmatprep.subr.bf16.mxu0 0
        %382 = vmatpush1.bf16.msra.mxu0 0
        %383 = vmatprep.subr.bf16.mxu0 0
        %384 = vmatpush1.bf16.msra.mxu0 0
        %385 = vmatprep.subr.bf16.mxu0 0
        %386 = vmatpush1.bf16.msra.mxu0 0
        %387 = vmatprep.subr.bf16.mxu0 0
        %388 = vmatpush1.bf16.msra.mxu0 0
        %389 = vmatprep.subr.bf16.mxu0 0
        %390 = vmatpush1.bf16.msra.mxu0 0
        %391 = vmatprep.subr.bf16.mxu0 0
        %392 = vmatpush1.bf16.msra.mxu0 0
        %393 = vmatprep.subr.bf16.mxu0 0
        %394 = vmatpush1.bf16.msra.mxu0 0
        %395 = vmatprep.mubr.bf16.mxu0 0
        %396 = vmatmul.mubr.bf16.gmra.mrb[0].mxu0 %v309
        %v397 = vpop.f32.mrb[0].mxu0
        %v398 = vadd.f32 %v214, %v397
        %v399 = vpop.f32.mrb[0].mxu0
        %v400 = vpop.f32.mrb[0].mxu0
        %v401 = vadd.f32 %v214, %v400
        %v402 = vpop.f32.mrb[0].mxu0
        %403 = vmatprep.mubr.bf16.mxu0 0
        %404 = vmatmul.mubr.bf16.gmra.mrb[0].mxu0 %v312
        %v405 = vpop.f32.mrb[0].mxu0
        %v406 = vadd.f32 %v214, %v405
        %v407 = vpop.f32.mrb[0].mxu0
        %v408 = vpop.f32.mrb[0].mxu0
        %v409 = vadd.f32 %v214, %v408
        %v410 = vpop.f32.mrb[0].mxu0
        %411 = vmatprep.mubr.bf16.mxu0 0
        %412 = vmatmul.mubr.bf16.gmra.mrb[0].mxu0 %v315
        %v413 = vpop.f32.mrb[0].mxu0
        %v414 = vadd.f32 %v214, %v413
        %v415 = vpop.f32.mrb[0].mxu0
        %v416 = vpop.f32.mrb[0].mxu0
        %v417 = vadd.f32 %v214, %v416
        %v418 = vpop.f32.mrb[0].mxu0
        %419 = vmatprep.mubr.bf16.mxu0 0
        %420 = vmatmul.mubr.bf16.gmra.mrb[0].mxu0 %v318
        %v421 = vpop.f32.mrb[0].mxu0
        %v422 = vadd.f32 %v214, %v421
        %v423 = vpop.f32.mrb[0].mxu0
        %v424 = vpop.f32.mrb[0].mxu0
        %v425 = vadd.f32 %v214, %v424
        %v426 = vpop.f32.mrb[0].mxu0
        %427 = vmatprep.mubr.bf16.mxu0 0
        %428 = vmatmul.mubr.bf16.gmra.mrb[0].mxu0 %v321
        %v429 = vpop.f32.mrb[0].mxu0
        %v430 = vadd.f32 %v214, %v429
        %v431 = vpop.f32.mrb[0].mxu0
        %v432 = vpop.f32.mrb[0].mxu0
        %v433 = vadd.f32 %v214, %v432
        %v434 = vpop.f32.mrb[0].mxu0
        %435 = vmatprep.mubr.bf16.mxu0 0
        %436 = vmatmul.mubr.bf16.gmra.mrb[0].mxu0 %v324
        %v437 = vpop.f32.mrb[0].mxu0
        %v438 = vadd.f32 %v214, %v437
        %v439 = vpop.f32.mrb[0].mxu0
        %v440 = vpop.f32.mrb[0].mxu0
        %v441 = vadd.f32 %v214, %v440
        %v442 = vpop.f32.mrb[0].mxu0
        %443 = vmatprep.mubr.bf16.mxu0 0
        %444 = vmatmul.mubr.bf16.gmra.mrb[0].mxu0 %v327
        %v445 = vpop.f32.mrb[0].mxu0
        %v446 = vadd.f32 %v214, %v445
        %v447 = vpop.f32.mrb[0].mxu0
        %v448 = vpop.f32.mrb[0].mxu0
        %v449 = vadd.f32 %v214, %v448
        %v450 = vpop.f32.mrb[0].mxu0
        %451 = vmatprep.mubr.bf16.mxu0 0
        %452 = vmatmul.mubr.bf16.gmra.mrb[0].mxu0 %v330
        %v453 = vpop.f32.mrb[0].mxu0
        %v454 = vadd.f32 %v214, %v453
        %v455 = vpop.f32.mrb[0].mxu0
        %v456 = vpop.f32.mrb[0].mxu0
        %v457 = vadd.f32 %v214, %v456
        %v458 = vpop.f32.mrb[0].mxu0
        %459 = vmatprep.mubr.bf16.mxu0 0
        %460 = vmatmul.mubr.bf16.gmra.mrb[0].mxu0 %v333
        %v461 = vpop.f32.mrb[0].mxu0
        %v462 = vadd.f32 %v214, %v461
        %v463 = vpop.f32.mrb[0].mxu0
        %v464 = vpop.f32.mrb[0].mxu0
        %v465 = vadd.f32 %v214, %v464
        %v466 = vpop.f32.mrb[0].mxu0
        %467 = vmatprep.mubr.bf16.mxu0 0
        %468 = vmatmul.mubr.bf16.gmra.mrb[0].mxu0 %v336
        %v469 = vpop.f32.mrb[0].mxu0
        %v470 = vadd.f32 %v214, %v469
        %v471 = vpop.f32.mrb[0].mxu0
        %v472 = vpop.f32.mrb[0].mxu0
        %v473 = vadd.f32 %v214, %v472
        %v474 = vpop.f32.mrb[0].mxu0
        %475 = vmatprep.mubr.bf16.mxu0 0
        %476 = vmatmul.mubr.bf16.gmra.mrb[0].mxu0 %v339
        %v477 = vpop.f32.mrb[0].mxu0
        %v478 = vadd.f32 %v214, %v477
        %v479 = vpop.f32.mrb[0].mxu0
        %v480 = vpop.f32.mrb[0].mxu0
        %v481 = vadd.f32 %v214, %v480
        %v482 = vpop.f32.mrb[0].mxu0
        %483 = vmatprep.mubr.bf16.mxu0 0
        %484 = vmatmul.mubr.bf16.gmra.mrb[0].mxu0 %v342
        %v485 = vpop.f32.mrb[0].mxu0
        %v486 = vadd.f32 %v214, %v485
        %v487 = vpop.f32.mrb[0].mxu0
        %v488 = vpop.f32.mrb[0].mxu0
        %v489 = vadd.f32 %v214, %v488
        %v490 = vpop.f32.mrb[0].mxu0
        %491 = vmatprep.mubr.bf16.mxu0 0
        %492 = vmatmul.mubr.bf16.gmra.mrb[0].mxu0 %v345
        %v493 = vpop.f32.mrb[0].mxu0
        %v494 = vadd.f32 %v214, %v493
        %v495 = vpop.f32.mrb[0].mxu0
        %v496 = vpop.f32.mrb[0].mxu0
        %v497 = vadd.f32 %v214, %v496
        %v498 = vpop.f32.mrb[0].mxu0
        %499 = vmatprep.mubr.bf16.mxu0 0
        %500 = vmatmul.mubr.bf16.gmra.mrb[0].mxu0 %v348
        %v501 = vpop.f32.mrb[0].mxu0
        %v502 = vadd.f32 %v214, %v501
        %v503 = vpop.f32.mrb[0].mxu0
        %v504 = vpop.f32.mrb[0].mxu0
        %v505 = vadd.f32 %v214, %v504
        %v506 = vpop.f32.mrb[0].mxu0
        %507 = vmatprep.mubr.bf16.mxu0 0
        %508 = vmatmul.mubr.bf16.gmra.mrb[0].mxu0 %v351
        %v509 = vpop.f32.mrb[0].mxu0
        %v510 = vadd.f32 %v214, %v509
        %v511 = vpop.f32.mrb[0].mxu0
        %v512 = vpop.f32.mrb[0].mxu0
        %v513 = vadd.f32 %v214, %v512
        %v514 = vpop.f32.mrb[0].mxu0
        %515 = vmatprep.mubr.bf16.mxu0 0
        %516 = vmatmul.mubr.bf16.gmra.mrb[0].mxu0 %v354
        %v517 = vpop.f32.mrb[0].mxu0
        %v518 = vadd.f32 %v214, %v517
        %v519 = vpop.f32.mrb[0].mxu0
        %v520 = vpop.f32.mrb[0].mxu0
        %v521 = vadd.f32 %v214, %v520
        %v522 = vpop.f32.mrb[0].mxu0
        %523 = vdwg.mxu0
        %v524 = vmax.f32 %v398, 0.0
        %v525 = vmax.f32 %v401, 0.0
        %v526 = vmax.f32 %v406, 0.0
        %v527 = vmax.f32 %v409, 0.0
        %v528 = vmax.f32 %v414, 0.0
        %v529 = vmax.f32 %v417, 0.0
        %v530 = vmax.f32 %v422, 0.0
        %v531 = vmax.f32 %v425, 0.0
        %v532 = vmax.f32 %v430, 0.0
        %v533 = vmax.f32 %v433, 0.0
        %v534 = vmax.f32 %v438, 0.0
        %v535 = vmax.f32 %v441, 0.0
        %v536 = vmax.f32 %v446, 0.0
        %v537 = vmax.f32 %v449, 0.0
        %v538 = vmax.f32 %v454, 0.0
        %v539 = vmax.f32 %v457, 0.0
        %v540 = vmax.f32 %v462, 0.0
        %v541 = vmax.f32 %v465, 0.0
        %v542 = vmax.f32 %v470, 0.0
        %v543 = vmax.f32 %v473, 0.0
        %v544 = vmax.f32 %v478, 0.0
        %v545 = vmax.f32 %v481, 0.0
        %v546 = vmax.f32 %v486, 0.0
        %v547 = vmax.f32 %v489, 0.0
        %v548 = vmax.f32 %v494, 0.0
        %v549 = vmax.f32 %v497, 0.0
        %v550 = vmax.f32 %v502, 0.0
        %v551 = vmax.f32 %v505, 0.0
        %v552 = vmax.f32 %v510, 0.0
        %v553 = vmax.f32 %v513, 0.0
        %v554 = vmax.f32 %v518, 0.0
        %v555 = vmax.f32 %v521, 0.0
        %v556 = vpack.c.bf16 %v525, %v524
        %v557 = vpack.c.bf16 %v527, %v526
        %v558 = vpack.c.bf16 %v529, %v528
        %v559 = vpack.c.bf16 %v531, %v530
        %v560 = vpack.c.bf16 %v533, %v532
        %v561 = vpack.c.bf16 %v535, %v534
        %v562 = vpack.c.bf16 %v537, %v536
        %v563 = vpack.c.bf16 %v539, %v538
        %v564 = vpack.c.bf16 %v541, %v540
        %v565 = vpack.c.bf16 %v543, %v542
        %v566 = vpack.c.bf16 %v545, %v544
        %v567 = vpack.c.bf16 %v547, %v546
        %v568 = vpack.c.bf16 %v549, %v548
        %v569 = vpack.c.bf16 %v551, %v550
        %v570 = vpack.c.bf16 %v553, %v552
        %v571 = vpack.c.bf16 %v555, %v554
        %v588 = vunpack.c.l.b16 %v556
        %v589 = vunpack.c.h.b16 %v556
        %v590 = vunpack.c.l.b16 %v557
        %v591 = vunpack.c.h.b16 %v557
        %v592 = vunpack.c.l.b16 %v558
        %v593 = vunpack.c.h.b16 %v558
        %v594 = vunpack.c.l.b16 %v559
        %v595 = vunpack.c.h.b16 %v559
        %v596 = vunpack.c.l.b16 %v560
        %v597 = vunpack.c.h.b16 %v560
        %v598 = vunpack.c.l.b16 %v561
        %v599 = vunpack.c.h.b16 %v561
        %v600 = vunpack.c.l.b16 %v562
        %v601 = vunpack.c.h.b16 %v562
        %v602 = vunpack.c.l.b16 %v563
        %v603 = vunpack.c.h.b16 %v563
        %v604 = vunpack.c.l.b16 %v564
        %v605 = vunpack.c.h.b16 %v564
        %v606 = vunpack.c.l.b16 %v565
        %v607 = vunpack.c.h.b16 %v565
        %v608 = vunpack.c.l.b16 %v566
        %v609 = vunpack.c.h.b16 %v566
        %v610 = vunpack.c.l.b16 %v567
        %v611 = vunpack.c.h.b16 %v567
        %v612 = vunpack.c.l.b16 %v568
        %v613 = vunpack.c.h.b16 %v568
        %v614 = vunpack.c.l.b16 %v569
        %v615 = vunpack.c.h.b16 %v569
        %v616 = vunpack.c.l.b16 %v570
        %v617 = vunpack.c.h.b16 %v570
        %v618 = vunpack.c.l.b16 %v571
        %v619 = vunpack.c.h.b16 %v571
        %v620 = vpack.c.b16 %v588, %v588
        %v621 = vpack.c.b16 %v589, %v589
        %v622 = vpack.c.b16 %v590, %v590
        %v623 = vpack.c.b16 %v591, %v591
        %v624 = vpack.c.b16 %v592, %v592
        %v625 = vpack.c.b16 %v593, %v593
        %v626 = vpack.c.b16 %v594, %v594
        %v627 = vpack.c.b16 %v595, %v595
        %v628 = vpack.c.b16 %v596, %v596
        %v629 = vpack.c.b16 %v597, %v597
        %v630 = vpack.c.b16 %v598, %v598
        %v631 = vpack.c.b16 %v599, %v599
        %v632 = vpack.c.b16 %v600, %v600
        %v633 = vpack.c.b16 %v601, %v601
        %v634 = vpack.c.b16 %v602, %v602
        %v635 = vpack.c.b16 %v603, %v603
        %v636 = vpack.c.b16 %v604, %v604
        %v637 = vpack.c.b16 %v605, %v605
        %v638 = vpack.c.b16 %v606, %v606
        %v639 = vpack.c.b16 %v607, %v607
        %v640 = vpack.c.b16 %v608, %v608
        %v641 = vpack.c.b16 %v609, %v609
        %v642 = vpack.c.b16 %v610, %v610
        %v643 = vpack.c.b16 %v611, %v611
        %v644 = vpack.c.b16 %v612, %v612
        %v645 = vpack.c.b16 %v613, %v613
        %v646 = vpack.c.b16 %v614, %v614
        %v647 = vpack.c.b16 %v615, %v615
        %v648 = vpack.c.b16 %v616, %v616
        %v649 = vpack.c.b16 %v617, %v617
        %v650 = vpack.c.b16 %v618, %v618
        %v651 = vpack.c.b16 %v619, %v619
        %684 = vst [vmem:[%s164] sm:$0xf] %v620
        %685 = vst [vmem:[%s164 + $0x4] sm:$0xf] %v621
        %686 = vst [vmem:[%s164 + $0x8] sm:$0xf] %v622
        %687 = vst [vmem:[%s164 + $0xc] sm:$0xf] %v623
        %688 = vst [vmem:[%s164 + $0x10] sm:$0xf] %v624
        %689 = vst [vmem:[%s164 + $0x14] sm:$0xf] %v625
        %690 = vst [vmem:[%s164 + $0x18] sm:$0xf] %v626
        %691 = vst [vmem:[%s164 + $0x1c] sm:$0xf] %v627
        %692 = vst [vmem:[%s164 + $0x20] sm:$0xf] %v628
        %693 = vst [vmem:[%s164 + $0x24] sm:$0xf] %v629
        %694 = vst [vmem:[%s164 + $0x28] sm:$0xf] %v630
        %695 = vst [vmem:[%s164 + $0x2c] sm:$0xf] %v631
        %696 = vst [vmem:[%s164 + $0x30] sm:$0xf] %v632
        %697 = vst [vmem:[%s164 + $0x34] sm:$0xf] %v633
        %698 = vst [vmem:[%s164 + $0x38] sm:$0xf] %v634
        %699 = vst [vmem:[%s164 + $0x3c] sm:$0xf] %v635
        %700 = vst [vmem:[%s164 + $0x40] sm:$0xf] %v636
        %701 = vst [vmem:[%s164 + $0x44] sm:$0xf] %v637
        %702 = vst [vmem:[%s164 + $0x48] sm:$0xf] %v638
        %703 = vst [vmem:[%s164 + $0x4c] sm:$0xf] %v639
        %704 = vst [vmem:[%s164 + $0x50] sm:$0xf] %v640
        %705 = vst [vmem:[%s164 + $0x54] sm:$0xf] %v641
        %706 = vst [vmem:[%s164 + $0x58] sm:$0xf] %v642
        %707 = vst [vmem:[%s164 + $0x5c] sm:$0xf] %v643
        %708 = vst [vmem:[%s164 + $0x60] sm:$0xf] %v644
        %709 = vst [vmem:[%s164 + $0x64] sm:$0xf] %v645
        %710 = vst [vmem:[%s164 + $0x68] sm:$0xf] %v646
        %711 = vst [vmem:[%s164 + $0x6c] sm:$0xf] %v647
        %712 = vst [vmem:[%s164 + $0x70] sm:$0xf] %v648
        %713 = vst [vmem:[%s164 + $0x74] sm:$0xf] %v649
        %714 = vst [vmem:[%s164 + $0x78] sm:$0xf] %v650
        %715 = vst [vmem:[%s164 + $0x7c] sm:$0xf] %v651
        %s716 = sand.u32 %s93, 1
        %s717 = scalar_lea.sflag [#allocation3], %s716
        %s718 = sand.u32 %s93, 1
        %s719 = smul.addr %s718, 128
        %s720 = scalar_lea.vmem [#allocation2], %s719
        // Predicated region
        $region33: #{tpu_custom_call.1} parent=31 // pred_check
          %p721 = pneg %p103
        $region34: #{tpu_custom_call.1} parent=31 // pred_check_branch
          %723 = sbr.rel (%p721) target = $region36
        $region35: #{tpu_custom_call.1} parent=31 // pred_region
          %s724 = smul.u32 32, %s17
          %s726 = ssub.s32 2048, 2048
          %727 = vsyncadd %s717, %s726
          %s728 = smul.addr %s724, 64
          %s729 = scalar_lea.hbm %s3, %s728
          %s730 = sshll.u32 %s720, 4
          %s731 = int_to_ptr.vmem [resolvable:$true] %s730
          %736 = dma.vmem_to_hbm [thread:$0]  %s731, 2048, %s729, %s717, 64, 64, 4
        $region36: #{tpu_custom_call.1} parent=31 // pred_fallthru
          _
      $region32: #{tpu_custom_call.1} parent=5 // pred_fallthru
        _
      %p737 = scmp.le.s32.totalorder 2, %s12
      // Predicated region
      $region37: #{tpu_custom_call.1} parent=5 // pred_check
        %p738 = pneg %p737
      $region38: #{tpu_custom_call.1} parent=5 // pred_check_branch
        %740 = sbr.rel (%p738) target = $region40
      $region39: #{tpu_custom_call.1} parent=5 // pred_region
        %s741 = ssub.s32 %s12, 2
        // Predicated region
        $region41: #{tpu_custom_call.1} parent=39 // pred_check
          %p742 = pneg %p109
        $region42: #{tpu_custom_call.1} parent=39 // pred_check_branch
          %744 = sbr.rel (%p742) target = $region44
        $region43: #{tpu_custom_call.1} parent=39 // pred_region
          %s745 = sand.u32 %s94, 1
          %s746 = scalar_lea.sflag [#allocation3], %s745
          %s747 = sand.u32 %s94, 1
          %s748 = smul.addr %s747, 128
          %s749 = scalar_lea.vmem [#allocation2], %s748
          %750 = dma.done %s746, 2048
        $region44: #{tpu_custom_call.1} parent=39 // pred_fallthru
          _
      $region40: #{tpu_custom_call.1} parent=5 // pred_fallthru
        _
    $region6: #{tpu_custom_call.1} parent=1 // loop_footer
      %s16 = sadd.s32 1, %s12
    $region7: #{tpu_custom_call.1} parent=1 // loop_footer_branch
      %11 = sbr.rel target = $region3
    $region8: #{tpu_custom_call.1} parent=1 // loop_exit
      _
    %751 = vsyncpa [#allocation3], 1
    %s752 = scalar_lea.sflag [#allocation3], 1
    %753 = vsyncpa %s752, 1

</llo_original>
